<compile_context>
chip_gen: v5e
topology: v5e:2x2
jax: 0.10.0
libtpu: 0.0.40
codegen_flags: <defaults>
</compile_context>

<pallas_src>
import jax
import jax.numpy as jnp
from jax.experimental import pallas as pl
from jax.experimental.pallas import tpu as pltpu


# ----------------------------------------------------------------------------
# helpers
# ----------------------------------------------------------------------------
def _round_up(x, m):
    return (x + m - 1) // m * m


def _device_kind():
    try:
        return jax.devices()[0].device_kind.lower()
    except Exception:
        return ""


def _vmem_capacity_bytes():
    """Per-core VMEM capacity (conservative fallbacks if the query fails)."""
    cap = None
    try:
        cap = int(pltpu.get_tpu_info().vmem_capacity_bytes)
    except Exception:
        cap = None
    kind = _device_kind()
    if cap is None or cap <= 0:
        if "v7" in kind:
            cap = 64 * 1024 * 1024
        elif kind:
            cap = 128 * 1024 * 1024          # v5e / v6e physical VMEM
        else:
            cap = 64 * 1024 * 1024           # unknown -> be conservative
    if "v7" in kind:                          # v7x: 64 MiB per TensorCore
        cap = min(cap, 64 * 1024 * 1024)
    return cap


def _prefer_lane256():
    # v6e / v7x MXUs are 2x256x256 -> TN=256 is full width there.
    # v5e (and older) MXUs are 128-wide; extra N padding would only cost HBM BW.
    kind = _device_kind()
    if not kind:
        return True
    return not any(t in kind for t in ("v2", "v3", "v4", "v5"))


def _largest_div_tile(total, cap):
    """Largest multiple of 128 that divides `total` and is <= cap (>=128)."""
    units = total // 128
    best = 1
    for d in range(1, units + 1):
        if units % d == 0 and 128 * d <= cap:
            best = d
    return 128 * best


def _tile_footprint(tb, tk, tn, op_is, out_is, k_tiled, w_bufs=2):
    f = 2 * tb * tk * op_is            # x tile (double-buffered)
    f += w_bufs * tk * tn * op_is      # weight tile
    f += 2 * tb * tn * out_is          # output tile
    f += 2 * tn * 4                    # bias tile (f32)
    if k_tiled:
        f += tb * tn * 4               # f32 accumulator scratch
    return f


def _weight_spec(block_shape, index_map, deep):
    """Weight BlockSpec; 3-deep pipeline for small-batch (short-dot) steps."""
    if deep:
        try:
            return pl.BlockSpec(block_shape, index_map,
                                pipeline_mode=pl.Buffered(3))
        except Exception:
            pass                         # older API: fall back to default depth
    return pl.BlockSpec(block_shape, index_map)


# ----------------------------------------------------------------------------
# kernels
# ----------------------------------------------------------------------------
def _masked_linear_kernel(x_ref, w_ref, b_ref, o_ref):
    # x_ref: (TB, K_pad)  w_ref: (K_pad, TN)  b_ref: (1, TN) f32  o_ref: (TB, TN)
    acc = jnp.dot(x_ref[...], w_ref[...], preferred_element_type=jnp.float32)
    o_ref[...] = (acc + b_ref[...]).astype(o_ref.dtype)


def _masked_linear_kernel_ktiled(x_ref, w_ref, b_ref, o_ref, acc_ref):
    # Grid axis 2 is the K reduction ("arbitrary", iterated last).
    k = pl.program_id(2)

    @pl.when(k == 0)
    def _init():
        acc_ref[...] = jnp.zeros_like(acc_ref)

    acc_ref[...] += jnp.dot(x_ref[...], w_ref[...],
                            preferred_element_type=jnp.float32)

    @pl.when(k == pl.num_programs(2) - 1)
    def _finalize():
        o_ref[...] = (acc_ref[...] + b_ref[...]).astype(o_ref.dtype)


# ----------------------------------------------------------------------------
# one-time (per layer) weight preparation -- cache the result and reuse it
# ----------------------------------------------------------------------------
def prepare_masked_linear(weight, mask, bias, cond_weight=None,
                          compute_dtype=None):
    """Precompute the padded, transposed, masked (and optionally bf16) weight.

    weight, mask: (out_features, in_features);  bias: (out_features,)
    cond_weight:  (out_features, cond_in_features) or None
    compute_dtype: optional MXU operand dtype (e.g. jnp.bfloat16); accumulation
                   in the kernel is always f32.
    Returns a dict of device arrays + static metadata to reuse for every
    forward call (no per-call weight HBM passes).
    """
    out_f, in_f = weight.shape
    w_masked = weight * mask                                     # exact: mask is 0/1
    if cond_weight is not None:
        w_all = jnp.concatenate([w_masked, cond_weight], axis=1)  # (O, K)
    else:
        w_all = w_masked
    K = w_all.shape[1]
    w_t = w_all.T                                                 # (K, O)

    op_dtype = jnp.dtype(compute_dtype) if compute_dtype is not None \
        else jnp.dtype(w_t.dtype)
    w_t = w_t.astype(op_dtype)

    K_pad = _round_up(K, 128)
    N_pad = _round_up(out_f, 128)
    if _prefer_lane256() and N_pad > 128 and N_pad % 256 != 0:
        N_pad = _round_up(out_f, 256)     # make TN=256 selectable on v6e/v7x

    w_p = jnp.pad(w_t, ((0, K_pad - K), (0, N_pad - out_f)))
    b_p = jnp.pad(bias.reshape(1, out_f).astype(jnp.float32),
                  ((0, 0), (0, N_pad - out_f)))
    return dict(w_p=w_p, b_p=b_p, K=K, in_features=in_f, out_features=out_f,
                K_pad=K_pad, N_pad=N_pad, op_dtype=op_dtype)


# ----------------------------------------------------------------------------
# per-call forward
# ----------------------------------------------------------------------------
def masked_linear_apply(prepared, inputs, cond_inputs=None, *, max_tk=None):
    """MaskedLinear.forward using cached prepared weights.

    inputs: (B, in_features); cond_inputs: (B, cond_in_features) or None.
    max_tk: optional cap on the K tile (forces K tiling; mainly for testing /
            very large fused K on v7x).
    Returns (B, out_features) in the dtype of `inputs`.
    """
    out_dtype = inputs.dtype
    B = inputs.shape[0]
    K, K_pad, N_pad = prepared["K"], prepared["K_pad"], prepared["N_pad"]
    out_f = prepared["out_features"]
    op_dtype = prepared["op_dtype"]
    w_p, b_p = prepared["w_p"], prepared["b_p"]

    if cond_inputs is not None:
        x_all = jnp.concatenate([inputs, cond_inputs], axis=1)
    else:
        x_all = inputs
    assert x_all.shape[1] == K, "inputs/cond_inputs width mismatch with prepare"
    x_all = x_all.astype(op_dtype)

    op_is = jnp.dtype(op_dtype).itemsize
    out_is = jnp.dtype(out_dtype).itemsize
    sublane = 16 if op_is == 2 else 8

    # ---- per-generation VMEM budgets --------------------------------------
    vmem_cap = _vmem_capacity_bytes()
    tile_budget = (vmem_cap * 5) // 8          # for the double-buffered tiles
    vmem_limit = (vmem_cap * 3) // 4

    # ---- tile sizing: TB large first, shrink TN -> K -> TB (last) ---------
    TB = min(_round_up(B, sublane), 512)
    TN = 256 if (N_pad % 256 == 0 and N_pad >= 256) else 128
    TN = min(TN, N_pad)
    TK = K_pad
    if max_tk is not None:
        TK = _largest_div_tile(K_pad, max(128, min(max_tk, K_pad)))

    def fits(tb, tk, tn):
        return _tile_footprint(tb, tk, tn, op_is, out_is, tk < K_pad) <= tile_budget

    if not fits(TB, TK, TN) and TN > 128:
        TN = 128
    while not fits(TB, TK, TN) and TK > 128:
        TK = _largest_div_tile(K_pad, TK // 2)
    while not fits(TB, TK, TN) and TB > sublane:
        TB = max(sublane, (TB // 2) // sublane * sublane)

    B_pad = _round_up(B, TB)
    x_p = jnp.pad(x_all, ((0, B_pad - B), (0, K_pad - K)))   # zero pad = exact

    Gi, Gj, Gk = B_pad // TB, N_pad // TN, K_pad // TK
    k_tiled = Gk > 1

    x_bytes = B_pad * K_pad * op_is
    w_bytes = K_pad * N_pad * op_is

    if k_tiled:
        # With K tiling both operands are re-streamed either way; keep batch
        # outer so the reduction axis stays last ("arbitrary").
        batch_outer = True
    else:
        # Whole-K: the operand pinned to the outer axis is fetched once, the
        # other is re-streamed once per outer step.  Pick the cheaper order.
        batch_outer = (x_bytes + w_bytes * Gi) <= (w_bytes + x_bytes * Gj)

    # Small-batch: deepen the weight pipeline so its DMA is not exposed.
    deep_w = (TB < 128 and batch_outer and Gj * Gk >= 3 and
              _tile_footprint(TB, TK, TN, op_is, out_is, k_tiled, w_bufs=3)
              <= tile_budget)

    if k_tiled:
        grid = (Gi, Gj, Gk)
        x_spec = pl.BlockSpec((TB, TK), lambda i, j, k: (i, k))
        w_spec = _weight_spec((TK, TN), lambda i, j, k: (k, j), deep_w)
        b_spec = pl.BlockSpec((1, TN), lambda i, j, k: (0, j))
        o_spec = pl.BlockSpec((TB, TN), lambda i, j, k: (i, j))
        dims = ("parallel", "parallel", "arbitrary")
        scratch = [pltpu.VMEM((TB, TN), jnp.float32)]
        kernel = _masked_linear_kernel_ktiled
        x_stream, w_stream = x_bytes * Gj, w_bytes * Gi
    elif batch_outer:
        grid = (Gi, Gj)
        x_spec = pl.BlockSpec((TB, TK), lambda i, j: (i, 0))
        w_spec = _weight_spec((TK, TN), lambda i, j: (0, j), deep_w)
        b_spec = pl.BlockSpec((1, TN), lambda i, j: (0, j))
        o_spec = pl.BlockSpec((TB, TN), lambda i, j: (i, j))
        dims = ("parallel", "parallel")
        scratch = []
        kernel = _masked_linear_kernel
        x_stream, w_stream = x_bytes, w_bytes * Gi
    else:  # weight outer: W fetched once, X re-streamed per N tile
        grid = (Gj, Gi)
        x_spec = pl.BlockSpec((TB, TK), lambda j, i: (i, 0))
        w_spec = _weight_spec((TK, TN), lambda j, i: (0, j), deep_w)
        b_spec = pl.BlockSpec((1, TN), lambda j, i: (0, j))
        o_spec = pl.BlockSpec((TB, TN), lambda j, i: (i, j))
        dims = ("parallel", "parallel")
        scratch = []
        kernel = _masked_linear_kernel
        x_stream, w_stream = x_bytes * Gj, w_bytes

    cost = pl.CostEstimate(
        flops=2 * B_pad * N_pad * K_pad,
        transcendentals=0,
        bytes_accessed=int(x_stream + w_stream + N_pad * 4
                           + B_pad * N_pad * out_is),
    )

    out_p = pl.pallas_call(
        kernel,
        out_shape=jax.ShapeDtypeStruct((B_pad, N_pad), out_dtype),
        grid=grid,
        in_specs=[x_spec, w_spec, b_spec],
        out_specs=o_spec,
        scratch_shapes=scratch,
        compiler_params=pltpu.CompilerParams(
            dimension_semantics=dims,
            vmem_limit_bytes=int(vmem_limit),
        ),
        cost_estimate=cost,
    )(x_p, w_p, b_p)

    return out_p[:B, :out_f]


def masked_linear(inputs, weight, mask, bias, cond_inputs=None, cond_weight=None,
                  compute_dtype=None, max_tk=None):
    """One-shot convenience wrapper (prepare + apply).

    For repeated forward passes, call prepare_masked_linear() once per layer
    and reuse the result with masked_linear_apply() -- that is where the
    per-call weight-preprocessing savings come from.
    """
    prepared = prepare_masked_linear(weight, mask, bias, cond_weight,
                                     compute_dtype)
    return masked_linear_apply(prepared, inputs, cond_inputs, max_tk=max_tk)


# ----------------------------------------------------------------------------
# self-test
# ----------------------------------------------------------------------------
if __name__ == "__main__":
    key = jax.random.PRNGKey(0)
    (k_x, k_w, k_b, k_cx, k_cw, k_m,
     k_x2, k_w2, k_b2, k_cx2, k_cw2, k_m2) = jax.random.split(key, 12)

    # ---- layer 1: small MADE-style masked linear with conditioning --------
    B, in_f, out_f, cond_f = 8, 32, 32, 16
    x = jax.random.normal(k_x, (B, in_f), dtype=jnp.float32)
    w = jax.random.normal(k_w, (out_f, in_f), dtype=jnp.float32) * 0.1
    b = jax.random.normal(k_b, (out_f,), dtype=jnp.float32) * 0.1
    cx = jax.random.normal(k_cx, (B, cond_f), dtype=jnp.float32)
    cw = jax.random.normal(k_cw, (out_f, cond_f), dtype=jnp.float32) * 0.1
    mask = (jax.random.uniform(k_m, (out_f, in_f)) > 0.5).astype(jnp.float32)

    ref = x @ (w * mask).T + b[None, :] + cx @ cw.T
    ref_nc = x @ (w * mask).T + b[None, :]

    # prepare once per layer, reuse across calls
    prep = prepare_masked_linear(w, mask, b, cw)
    out = jax.block_until_ready(masked_linear_apply(prep, x, cx))
    assert out.shape == (B, out_f)
    assert jnp.allclose(out, ref, atol=2e-5, rtol=2e-5)

    out_again = jax.block_until_ready(masked_linear_apply(prep, x, cx))
    assert jnp.allclose(out_again, ref, atol=2e-5, rtol=2e-5)

    prep_nc = prepare_masked_linear(w, mask, b)
    out_nc = jax.block_until_ready(masked_linear_apply(prep_nc, x))
    assert out_nc.shape == (B, out_f)
    assert jnp.allclose(out_nc, ref_nc, atol=2e-5, rtol=2e-5)

    # ---- layer 2: exercises the K-tiled accumulator path ------------------
    B2, in2, out2_f, cond2 = 16, 200, 32, 24
    x2 = jax.random.normal(k_x2, (B2, in2), dtype=jnp.float32)
    w2 = jax.random.normal(k_w2, (out2_f, in2), dtype=jnp.float32) * 0.05
    b2 = jax.random.normal(k_b2, (out2_f,), dtype=jnp.float32) * 0.1
    cx2 = jax.random.normal(k_cx2, (B2, cond2), dtype=jnp.float32)
    cw2 = jax.random.normal(k_cw2, (out2_f, cond2), dtype=jnp.float32) * 0.05
    m2 = (jax.random.uniform(k_m2, (out2_f, in2)) > 0.5).astype(jnp.float32)

    ref2 = x2 @ (w2 * m2).T + b2[None, :] + cx2 @ cw2.T
    prep2 = prepare_masked_linear(w2, m2, b2, cw2)
    o2 = jax.block_until_ready(masked_linear_apply(prep2, x2, cx2, max_tk=128))
    assert o2.shape == (B2, out2_f)
    assert jnp.allclose(o2, ref2, atol=1e-4, rtol=1e-4)

    # ---- layer 3: bf16 MXU operands + deep weight pipeline (small batch) --
    out3_f = 640
    w3 = jax.random.normal(k_w2, (out3_f, in_f), dtype=jnp.float32) * 0.1
    b3 = jax.random.normal(k_b2, (out3_f,), dtype=jnp.float32) * 0.1
    m3 = (jax.random.uniform(k_m2, (out3_f, in_f)) > 0.5).astype(jnp.float32)

    ref3 = x @ (w3 * m3).T + b3[None, :]
    prep3 = prepare_masked_linear(w3, m3, b3, compute_dtype=jnp.bfloat16)
    o3 = jax.block_until_ready(masked_linear_apply(prep3, x))
    assert o3.shape == (B, out3_f)
    assert jnp.allclose(o3, ref3, atol=5e-2, rtol=5e-2)

    print("KERNEL_OK")
</pallas_src>

<mosaic_0001>
module attributes {stable_mosaic.version = 11 : i64} {
  func.func @_masked_linear_kernel(%arg0: i32, %arg1: i32, %arg2: memref<8x128xf32, #tpu.memory_space<vmem>>, %arg3: memref<128x128xf32, #tpu.memory_space<vmem>>, %arg4: memref<1x128xf32, #tpu.memory_space<vmem>>, %arg5: memref<8x128xf32, #tpu.memory_space<vmem>>) attributes {dimension_semantics = [#tpu.dimension_semantics<parallel>, #tpu.dimension_semantics<parallel>], iteration_bounds = array<i64: 1, 1>, scalar_prefetch = 0 : i64, scratch_operands = 0 : i64, tpu.core_type = #tpu.core_type<tc>, window_params = [{transform_indices = @transform_0, window_bounds = array<i64: 8, 128>}, {transform_indices = @transform_1, window_bounds = array<i64: 128, 128>}, {transform_indices = @transform_2, window_bounds = array<i64: 1, 128>}, {transform_indices = @transform_3, window_bounds = array<i64: 8, 128>}]} {
    %c0 = arith.constant 0 : index
    %c0_0 = arith.constant 0 : index
    %0 = vector.load %arg2[%c0, %c0_0] : memref<8x128xf32, #tpu.memory_space<vmem>>, vector<8x128xf32>
    %c0_1 = arith.constant 0 : index
    %c0_2 = arith.constant 0 : index
    %1 = vector.load %arg3[%c0_1, %c0_2] : memref<128x128xf32, #tpu.memory_space<vmem>>, vector<128x128xf32>
    %cst = arith.constant dense<0.000000e+00> : vector<8x128xf32>
    %2 = tpu.matmul %0, %1, %cst {dimension_numbers = #tpu.dot_dimension_numbers<[1], [0], [0], [1], [0, 0, 1, 1], [], []>} : vector<8x128xf32>, vector<128x128xf32>, vector<8x128xf32> -> vector<8x128xf32>
    %c0_3 = arith.constant 0 : index
    %c0_4 = arith.constant 0 : index
    %3 = vector.load %arg4[%c0_3, %c0_4] : memref<1x128xf32, #tpu.memory_space<vmem>>, vector<1x128xf32>
    %4 = vector.broadcast %3 : vector<1x128xf32> to vector<8x128xf32>
    %5 = arith.addf %2, %4 : vector<8x128xf32>
    %c0_5 = arith.constant 0 : index
    %c0_6 = arith.constant 0 : index
    %6 = vector.load %arg5[%c0_5, %c0_6] : memref<8x128xf32, #tpu.memory_space<vmem>>, vector<8x128xf32>
    tpu.vector_store %arg5[%c0_5, %c0_6], %5 {strides = array<i32>} : memref<8x128xf32, #tpu.memory_space<vmem>>, vector<8x128xf32>,
    return
  }
  func.func @transform_0(%arg0: i32, %arg1: i32) -> (i32, i32) {
    %c0_i32 = arith.constant 0 : i32
    %c0_i32_0 = arith.constant 0 : i32
    return %arg0, %c0_i32 : i32, i32
  }
  func.func @transform_1(%arg0: i32, %arg1: i32) -> (i32, i32) {
    %c0_i32 = arith.constant 0 : i32
    %c0_i32_0 = arith.constant 0 : i32
    return %c0_i32, %arg1 : i32, i32
  }
  func.func @transform_2(%arg0: i32, %arg1: i32) -> (i32, i32) {
    %c0_i32 = arith.constant 0 : i32
    %c0_i32_0 = arith.constant 0 : i32
    return %c0_i32, %arg1 : i32, i32
  }
  func.func @transform_3(%arg0: i32, %arg1: i32) -> (i32, i32) {
    %c0_i32 = arith.constant 0 : i32
    return %arg0, %arg1 : i32, i32
  }
}

</mosaic_0001>

<llo_original>
// kernel: tpu_custom_call.1
$region0: #{tpu_custom_call.1}
  #allocation0 [shape = 'u32[]', space=smem, size = 0x4, offset = 0x4, fixed_abs, tag = 'smem constant byte address 0x4 - core index']
  #allocation1 [shape = 'u32[72,128]{1,0:T(1,128)}', space=vmem, size = 0x9000, scoped, tag = 'internal scratch']
  %s0 = inlined_call_operand.hbm [shape: f32[8,128], index: 0, kind: input, shape index: {}]
  %s1 = inlined_call_operand.hbm [shape: f32[128,128], index: 1, kind: input, shape index: {}]
  %s2 = inlined_call_operand.vmem [shape: f32[1,128], index: 2, kind: input, shape index: {}]
  %s3 = inlined_call_operand.hbm [shape: f32[8,128], index: 3, kind: output, shape index: {}]
  %s4 = sld [smem:[#allocation0]]
  $region30: #{tpu_custom_call.1} parent=0
    _
  %s6 = ssub.s32 1, %s4
  %s7 = scalar_select 0, %s6, %s4
  $region1: #{tpu_custom_call.1} parent=0
    #allocation2 [shape = 'u8[4096]{0}', space=vmem, size = 0x1000, scoped, tag = 'input window, operand 0, single buffered']
    #allocation3 [shape = 's32[1]{0}', space=sflag, size = 0x4, scoped, tag = 'scoped memory for tpu_custom_call.1']
    #allocation4 [shape = 's32[1]{0}', space=sflag, size = 0x4, scoped, tag = 'scoped memory for tpu_custom_call.1']
    #allocation5 [shape = 'u8[65536]{0}', space=vmem, size = 0x10000, scoped, tag = 'input window, operand 1, single buffered']
    #allocation6 [shape = 's32[1]{0}', space=sflag, size = 0x4, scoped, tag = 'scoped memory for tpu_custom_call.1']
    #allocation7 [shape = 'u8[4096]{0}', space=vmem, size = 0x1000, scoped, tag = 'output window, operand 0, single buffered']
    %8 = vsyncpa [#allocation3], 0
    %9 = vsyncpa [#allocation6], 0
    %10 = vsyncpa [#allocation4], 0
    // Predicated region
    $region2: #{tpu_custom_call.1} parent=1 // pred_check
      _
    $region3: #{tpu_custom_call.1} parent=1 // pred_check_branch
      %12 = sbr.rel (0) target = $region5
    $region4: #{tpu_custom_call.1} parent=1 // pred_region
      %14 = vsyncadd [#allocation3], 0
      %s16 = sshll.u32 %s0, 4
      %s17 = int_to_ptr.hbm [resolvable:$true] %s16
      %s18 = sshll.u32 [#allocation2], 4
      %s19 = int_to_ptr.vmem [resolvable:$true] %s18
      %21 = dma.hbm_to_vmem [thread:$0]  %s17, 128, %s19, [#allocation3]
    $region5: #{tpu_custom_call.1} parent=1 // pred_fallthru
      _
    // Predicated region
    $region6: #{tpu_custom_call.1} parent=1 // pred_check
      _
    $region7: #{tpu_custom_call.1} parent=1 // pred_check_branch
      %23 = sbr.rel (0) target = $region9
    $region8: #{tpu_custom_call.1} parent=1 // pred_region
      %25 = vsyncadd [#allocation6], 0
      %s26 = sshll.u32 %s1, 4
      %s27 = int_to_ptr.hbm [resolvable:$true] %s26
      %s28 = sshll.u32 [#allocation5], 4
      %s29 = int_to_ptr.vmem [resolvable:$true] %s28
      %34 = dma.hbm_to_vmem [thread:$0]  %s27, 2048, %s29, [#allocation6], 128, 128, 8
    $region9: #{tpu_custom_call.1} parent=1 // pred_fallthru
      _
    // Predicated region
    $region10: #{tpu_custom_call.1} parent=1 // pred_check
      _
    $region11: #{tpu_custom_call.1} parent=1 // pred_check_branch
      %36 = sbr.rel (0) target = $region13
    $region12: #{tpu_custom_call.1} parent=1 // pred_region
      _
    $region13: #{tpu_custom_call.1} parent=1 // pred_fallthru
      _
    // Predicated region
    $region14: #{tpu_custom_call.1} parent=1 // pred_check
      _
    $region15: #{tpu_custom_call.1} parent=1 // pred_check_branch
      %38 = sbr.rel (0) target = $region17
    $region16: #{tpu_custom_call.1} parent=1 // pred_region
      %40 = dma.done [#allocation3], 128
    $region17: #{tpu_custom_call.1} parent=1 // pred_fallthru
      _
    // Predicated region
    $region18: #{tpu_custom_call.1} parent=1 // pred_check
      _
    $region19: #{tpu_custom_call.1} parent=1 // pred_check_branch
      %42 = sbr.rel (0) target = $region21
    $region20: #{tpu_custom_call.1} parent=1 // pred_region
      %44 = dma.done [#allocation6], 2048
    $region21: #{tpu_custom_call.1} parent=1 // pred_fallthru
      _
    %v45 = vld [vmem:[#allocation2] sm:$0xff]
    %v46 = vld [vmem:[#allocation5] sm:$0xff]
    %v47 = vld [vmem:[#allocation5 + $0x8] sm:$0xff]
    %v48 = vld [vmem:[#allocation5 + $0x10] sm:$0xff]
    %v49 = vld [vmem:[#allocation5 + $0x18] sm:$0xff]
    %v50 = vld [vmem:[#allocation5 + $0x20] sm:$0xff]
    %v51 = vld [vmem:[#allocation5 + $0x28] sm:$0xff]
    %v52 = vld [vmem:[#allocation5 + $0x30] sm:$0xff]
    %v53 = vld [vmem:[#allocation5 + $0x38] sm:$0xff]
    %v54 = vld [vmem:[#allocation5 + $0x40] sm:$0xff]
    %v55 = vld [vmem:[#allocation5 + $0x48] sm:$0xff]
    %v56 = vld [vmem:[#allocation5 + $0x50] sm:$0xff]
    %v57 = vld [vmem:[#allocation5 + $0x58] sm:$0xff]
    %v58 = vld [vmem:[#allocation5 + $0x60] sm:$0xff]
    %v59 = vld [vmem:[#allocation5 + $0x68] sm:$0xff]
    %v60 = vld [vmem:[#allocation5 + $0x70] sm:$0xff]
    %v61 = vld [vmem:[#allocation5 + $0x78] sm:$0xff]
    %v62 = vld [vmem:[%s2] sm:$0x1]
    %v64 = vperm.slane %v62, 0
    %66 = vmatpush.msra.mxu0 %v61
    %67 = vmatpush.msra.mxu0 %v60
    %68 = vmatpush.msra.mxu0 %v59
    %69 = vmatpush.msra.mxu0 %v58
    %70 = vmatpush.msra.mxu0 %v57
    %71 = vmatpush.msra.mxu0 %v56
    %72 = vmatpush.msra.mxu0 %v55
    %73 = vmatpush.msra.mxu0 %v54
    %74 = vmatpush.msra.mxu0 %v53
    %75 = vmatpush.msra.mxu0 %v52
    %76 = vmatpush.msra.mxu0 %v51
    %77 = vmatpush.msra.mxu0 %v50
    %78 = vmatpush.msra.mxu0 %v49
    %79 = vmatpush.msra.mxu0 %v48
    %80 = vmatpush.msra.mxu0 %v47
    %81 = vmatpush.msra.mxu0 %v46
    %82 = vmatmul.f32.gmra.mxu0 %v45
    %v83 = vpop.f32.mrf.mxu0
    %v84 = vadd.f32 %v64, %v83
    %85 = vdwg.mxu0
    %86 = vst [vmem:[#allocation7] sm:$0xff] %v84
    // Predicated region
    $region22: #{tpu_custom_call.1} parent=1 // pred_check
      _
    $region23: #{tpu_custom_call.1} parent=1 // pred_check_branch
      %88 = sbr.rel (0) target = $region25
    $region24: #{tpu_custom_call.1} parent=1 // pred_region
      %90 = vsyncadd [#allocation4], 0
      %s92 = sshll.u32 [#allocation7], 4
      %s93 = int_to_ptr.vmem [resolvable:$true] %s92
      %s94 = sshll.u32 %s3, 4
      %s95 = int_to_ptr.hbm [resolvable:$true] %s94
      %97 = dma.vmem_to_hbm [thread:$0]  %s93, 128, %s95, [#allocation4]
    $region25: #{tpu_custom_call.1} parent=1 // pred_fallthru
      _
    // Predicated region
    $region26: #{tpu_custom_call.1} parent=1 // pred_check
      _
    $region27: #{tpu_custom_call.1} parent=1 // pred_check_branch
      %99 = sbr.rel (0) target = $region29
    $region28: #{tpu_custom_call.1} parent=1 // pred_region
      %101 = dma.done [#allocation4], 128
    $region29: #{tpu_custom_call.1} parent=1 // pred_fallthru
      _
    %102 = vsyncpa [#allocation3], 1
    %103 = vsyncpa [#allocation6], 1
    %104 = vsyncpa [#allocation4], 1

</llo_original>
